<compile_context>
chip_gen: v7x
topology: tpu7x:2x2x1
jax: 0.10.0
libtpu: 0.0.40
codegen_flags: <defaults>
</compile_context>

<pallas_src>
import jax
import jax.numpy as jnp
from jax.experimental import pallas as pl
from jax.experimental.pallas import tpu as pltpu

# Small shapes consistent with the module definition (M = D_in // 2).
N_BATCH = 8
D_IN = 32
M = D_IN // 2          # 16
B_HID = 64             # stands in for the original B = 350
D_OUT = 4

LANES = 128            # TPU lane width; every activation is padded to this
Y_OFF = 64             # logits live in lanes [Y_OFF, Y_OFF + D_OUT) of the output slab
assert B_HID <= Y_OFF and Y_OFF + D_OUT <= LANES, "h and y must share one 128-lane slab"

# Row offsets inside the packed bf16 weight slab [W_ROWS, 128] (all 8-aligned).
_W1_OFF = 0                       # [D_IN, 128]  cols 0..M-1 valid
_W2_OFF = _W1_OFF + D_IN          # [128, 128]   rows 0..M-1, cols 0..B_HID-1 valid
_W3_OFF = _W2_OFF + LANES         # [128, 128]   rows 0..B_HID-1, cols 0..M-1 valid
_W4_OFF = _W3_OFF + LANES         # [128, 128]   rows 0..M-1, cols Y_OFF..Y_OFF+D_OUT-1
W_ROWS = _W4_OFF + LANES          # 32 + 3*128 = 416 rows (~104 KiB bf16)

# Bias slab [8, 128] f32: row 0 = b1, row 1 = b3' = b2@W3 + b3, row 2 = b2|b4 merged.
B_ROWS = 8


def mlp_kernel(x_ref, w_ref, b_ref, out_ref):
    """One batch tile; params are small grid-invariant VMEM-resident slabs."""
    x = x_ref[...].astype(jnp.bfloat16)               # [TB, D_IN]

    b1 = b_ref[0:1, :]                                 # f32, lanes 0..M-1 valid
    b3p = b_ref[1:2, :]                                # f32, b2@W3 + b3, lanes 0..M-1
    b24 = b_ref[2:3, :]                                # f32, b2 in 0..63 | b4 in 64..67

    w1 = w_ref[_W1_OFF:_W1_OFF + D_IN, :]              # bf16 [32, 128]
    w2 = w_ref[_W2_OFF:_W2_OFF + LANES, :]             # bf16 [128, 128]
    w3 = w_ref[_W3_OFF:_W3_OFF + LANES, :]             # bf16 [128, 128]
    w4 = w_ref[_W4_OFF:_W4_OFF + LANES, :]             # bf16 [128, 128]

    # Zero-padded lanes stay exactly zero through the chain (tanh(0) == 0), so
    # every op below runs on full, unmasked [TB, 128] tiles and the final slab
    # add is exact.
    a1 = jnp.tanh(jnp.dot(x, w1, preferred_element_type=jnp.float32) + b1)
    # TODO(synk): tanh runs on [TB,128] tiles with only M=16 valid lanes (EUP
    # waste); see feature-major note at top of file.
    h_nb = jnp.dot(a1.astype(jnp.bfloat16), w2,
                   preferred_element_type=jnp.float32)            # lanes 0..63 (no b2 yet)
    a3 = jnp.tanh(jnp.dot(h_nb.astype(jnp.bfloat16), w3,
                          preferred_element_type=jnp.float32) + b3p)
    y_nb = jnp.dot(a3.astype(jnp.bfloat16), w4,
                   preferred_element_type=jnp.float32)            # lanes 64..67 (no b4 yet)

    # h_nb zero outside lanes 0..63, y_nb zero outside 64..67, b24 carries both
    # biases -> one lane-dense unmasked [TB, 128] store.
    out_ref[...] = (h_nb + y_nb + b24).astype(out_ref.dtype)


def pack_params(params):
    """Pack (W_i, b_i) into a bf16 weight slab + f32 bias slab (done once)."""
    (w1, b1), (w2, b2), (w3, b3), (w4, b4) = params

    w = jnp.zeros((W_ROWS, LANES), jnp.float32)
    w = w.at[_W1_OFF:_W1_OFF + D_IN, :M].set(w1)
    w = w.at[_W2_OFF:_W2_OFF + M, :B_HID].set(w2)
    w = w.at[_W3_OFF:_W3_OFF + B_HID, :M].set(w3)
    w = w.at[_W4_OFF:_W4_OFF + M, Y_OFF:Y_OFF + D_OUT].set(w4)
    w_slab = w.astype(jnp.bfloat16)

    b = jnp.zeros((B_ROWS, LANES), jnp.float32)
    b = b.at[0, :M].set(b1.reshape(-1))
    # Fold b2 through fc3 (f32, exact): tanh(h@W3 + b3) == tanh(h_nb@W3 + b3')
    b3p = (b2.reshape(1, -1) @ w3 + b3.reshape(1, -1)).reshape(-1)
    b = b.at[1, :M].set(b3p)
    # Merged bias row for the final slab add (disjoint lane windows).
    b = b.at[2, :B_HID].set(b2.reshape(-1))
    b = b.at[2, Y_OFF:Y_OFF + D_OUT].set(b4.reshape(-1))
    b_slab = b

    # Guard the zero-padding invariant that makes `h_nb + y_nb` a valid merge.
    assert float(jnp.abs(w_slab[_W2_OFF:_W2_OFF + LANES, B_HID:]).max()) == 0.0
    assert float(jnp.abs(w_slab[_W4_OFF:_W4_OFF + LANES, :Y_OFF]).max()) == 0.0
    assert float(jnp.abs(w_slab[_W4_OFF:_W4_OFF + LANES, Y_OFF + D_OUT:]).max()) == 0.0
    assert float(jnp.abs(b_slab[2, Y_OFF + D_OUT:]).max()) == 0.0
    return w_slab, b_slab


def _round_up(x, m):
    return ((x + m - 1) // m) * m


def _pick_batch_tile(n):
    """Large tiles (amortize ~0.35us/step + big DMAs) but keep ~8 grid steps so
    the 'parallel' batch axis can shard across v7x's two TensorCores; cap at
    2048 rows so double-buffered blocks + intermediates fit v5e's VMEM budget."""
    n8 = _round_up(n, 8)
    return max(8, min(2048, n8, _round_up(max(n8 // 8, 1), 8)))


def net_forward(x, w_slab, b_slab, *, batch_tile=None):
    """Returns (y, h) like the PyTorch module's forward."""
    n = x.shape[0]
    tb = batch_tile if batch_tile is not None else _pick_batch_tile(n)
    n_pad = _round_up(n, tb)
    if n_pad != n:
        x = jnp.pad(x, ((0, n_pad - n), (0, 0)))

    out = pl.pallas_call(
        mlp_kernel,
        out_shape=jax.ShapeDtypeStruct((n_pad, LANES), jnp.float32),
        grid=(n_pad // tb,),
        in_specs=[
            pl.BlockSpec((tb, D_IN), lambda i: (i, 0)),
            # Packed param slabs: whole-array, VMEM-resident across all steps.
            pl.BlockSpec(memory_space=pltpu.MemorySpace.VMEM),
            pl.BlockSpec(memory_space=pltpu.MemorySpace.VMEM),
        ],
        out_specs=pl.BlockSpec((tb, LANES), lambda i: (i, 0)),
        compiler_params=pltpu.CompilerParams(
            dimension_semantics=("parallel",),
            vmem_limit_bytes=32 * 1024 * 1024,
        ),
    )(x, w_slab, b_slab)

    h = out[:n, :B_HID]
    y = out[:n, Y_OFF:Y_OFF + D_OUT]
    return y, h


def init_params(key):
    """Deterministic init mimicking nn.Linear's U(-1/sqrt(fan_in), +1/sqrt(fan_in))."""
    def linear(key, fan_in, fan_out):
        kw, kb = jax.random.split(key)
        bound = 1.0 / jnp.sqrt(jnp.float32(fan_in))
        # Stored as [in, out] (transposed vs PyTorch) for x @ W in the kernel.
        w = jax.random.uniform(kw, (fan_in, fan_out), jnp.float32, -bound, bound)
        b = jax.random.uniform(kb, (1, fan_out), jnp.float32, -bound, bound)
        return w, b

    k1, k2, k3, k4 = jax.random.split(key, 4)
    return (
        linear(k1, D_IN, M),       # fc1
        linear(k2, M, B_HID),      # fc2
        linear(k3, B_HID, M),      # fc3
        linear(k4, M, D_OUT),      # fc4
    )


def reference_forward(x, params):
    """Pure-JAX f32 reference for correctness checking."""
    (w1, b1), (w2, b2), (w3, b3), (w4, b4) = params
    a1 = jnp.tanh(x @ w1 + b1)
    h = a1 @ w2 + b2
    a3 = jnp.tanh(h @ w3 + b3)
    y = a3 @ w4 + b4
    return y, h


if __name__ == "__main__":
    key = jax.random.PRNGKey(0)
    kx, kx2, kp = jax.random.split(key, 3)

    params = init_params(kp)
    w_slab, b_slab = pack_params(params)      # pack once; re-used across calls

    # bf16 MXU inputs (f32 accumulation) -> relaxed tolerance vs the f32 reference.
    ATOL, RTOL = 5e-2, 5e-2

    # Small batch (single grid step).
    x = jax.random.normal(kx, (N_BATCH, D_IN), dtype=jnp.float32)
    y, h = net_forward(x, w_slab, b_slab)
    jax.block_until_ready((y, h))
    y_ref, h_ref = reference_forward(x, params)
    assert y.shape == (N_BATCH, D_OUT) and h.shape == (N_BATCH, B_HID)
    assert jnp.allclose(y, y_ref, atol=ATOL, rtol=RTOL)
    assert jnp.allclose(h, h_ref, atol=ATOL, rtol=RTOL)

    # Larger, non-tile-aligned batch (multi-step grid + padded tail path).
    n_big = 600
    x2 = jax.random.normal(kx2, (n_big, D_IN), dtype=jnp.float32)
    y2, h2 = net_forward(x2, w_slab, b_slab)
    jax.block_until_ready((y2, h2))
    y2_ref, h2_ref = reference_forward(x2, params)
    assert y2.shape == (n_big, D_OUT) and h2.shape == (n_big, B_HID)
    assert jnp.allclose(y2, y2_ref, atol=ATOL, rtol=RTOL)
    assert jnp.allclose(h2, h2_ref, atol=ATOL, rtol=RTOL)

    print("KERNEL_OK")
</pallas_src>

<mosaic_0001>
module attributes {stable_mosaic.version = 11 : i64} {
  func.func @mlp_kernel(%arg0: i32, %arg1: memref<8x32xf32, #tpu.memory_space<vmem>>, %arg2: memref<416x128xbf16, #tpu.memory_space<vmem>>, %arg3: memref<8x128xf32, #tpu.memory_space<vmem>>, %arg4: memref<8x128xf32, #tpu.memory_space<vmem>>) attributes {dimension_semantics = [#tpu.dimension_semantics<parallel>], iteration_bounds = array<i64: 1>, scalar_prefetch = 0 : i64, scratch_operands = 0 : i64, tpu.core_type = #tpu.core_type<tc>, window_params = [{transform_indices = @transform_0, window_bounds = array<i64: 8, 32>}, {pipeline_mode = #tpu.pipeline_mode<synchronous>, transform_indices = @transform_1, window_bounds = array<i64: 416, 128>}, {pipeline_mode = #tpu.pipeline_mode<synchronous>, transform_indices = @transform_2, window_bounds = array<i64: 8, 128>}, {transform_indices = @transform_3, window_bounds = array<i64: 8, 128>}]} {
    %c0 = arith.constant 0 : index
    %c0_0 = arith.constant 0 : index
    %0 = vector.load %arg1[%c0, %c0_0] : memref<8x32xf32, #tpu.memory_space<vmem>>, vector<8x32xf32>
    %1 = arith.truncf %0 : vector<8x32xf32> to vector<8x32xbf16>
    %c0_1 = arith.constant 0 : index
    %c0_2 = arith.constant 0 : index
    %2 = vector.load %arg3[%c0_1, %c0_2] : memref<8x128xf32, #tpu.memory_space<vmem>>, vector<1x128xf32>
    %c1 = arith.constant 1 : index
    %c0_3 = arith.constant 0 : index
    %3 = vector.load %arg3[%c1, %c0_3] : memref<8x128xf32, #tpu.memory_space<vmem>>, vector<1x128xf32>
    %c2 = arith.constant 2 : index
    %c0_4 = arith.constant 0 : index
    %4 = vector.load %arg3[%c2, %c0_4] : memref<8x128xf32, #tpu.memory_space<vmem>>, vector<1x128xf32>
    %c0_5 = arith.constant 0 : index
    %c0_6 = arith.constant 0 : index
    %5 = vector.load %arg2[%c0_5, %c0_6] : memref<416x128xbf16, #tpu.memory_space<vmem>>, vector<32x128xbf16>
    %c32 = arith.constant 32 : index
    %c0_7 = arith.constant 0 : index
    %6 = vector.load %arg2[%c32, %c0_7] : memref<416x128xbf16, #tpu.memory_space<vmem>>, vector<128x128xbf16>
    %c160 = arith.constant 160 : index
    %c0_8 = arith.constant 0 : index
    %7 = vector.load %arg2[%c160, %c0_8] : memref<416x128xbf16, #tpu.memory_space<vmem>>, vector<128x128xbf16>
    %c288 = arith.constant 288 : index
    %c0_9 = arith.constant 0 : index
    %8 = vector.load %arg2[%c288, %c0_9] : memref<416x128xbf16, #tpu.memory_space<vmem>>, vector<128x128xbf16>
    %cst = arith.constant dense<0.000000e+00> : vector<8x128xf32>
    %9 = tpu.matmul %1, %5, %cst {dimension_numbers = #tpu.dot_dimension_numbers<[1], [0], [0], [1], [0, 0, 1, 1], [], []>} : vector<8x32xbf16>, vector<32x128xbf16>, vector<8x128xf32> -> vector<8x128xf32>
    %10 = vector.broadcast %2 : vector<1x128xf32> to vector<8x128xf32>
    %11 = arith.addf %9, %10 : vector<8x128xf32>
    %12 = math.tanh %11 : vector<8x128xf32>
    %13 = arith.truncf %12 : vector<8x128xf32> to vector<8x128xbf16>
    %cst_10 = arith.constant dense<0.000000e+00> : vector<8x128xf32>
    %14 = tpu.matmul %13, %6, %cst_10 {dimension_numbers = #tpu.dot_dimension_numbers<[1], [0], [0], [1], [0, 0, 1, 1], [], []>} : vector<8x128xbf16>, vector<128x128xbf16>, vector<8x128xf32> -> vector<8x128xf32>
    %15 = arith.truncf %14 : vector<8x128xf32> to vector<8x128xbf16>
    %cst_11 = arith.constant dense<0.000000e+00> : vector<8x128xf32>
    %16 = tpu.matmul %15, %7, %cst_11 {dimension_numbers = #tpu.dot_dimension_numbers<[1], [0], [0], [1], [0, 0, 1, 1], [], []>} : vector<8x128xbf16>, vector<128x128xbf16>, vector<8x128xf32> -> vector<8x128xf32>
    %17 = vector.broadcast %3 : vector<1x128xf32> to vector<8x128xf32>
    %18 = arith.addf %16, %17 : vector<8x128xf32>
    %19 = math.tanh %18 : vector<8x128xf32>
    %20 = arith.truncf %19 : vector<8x128xf32> to vector<8x128xbf16>
    %cst_12 = arith.constant dense<0.000000e+00> : vector<8x128xf32>
    %21 = tpu.matmul %20, %8, %cst_12 {dimension_numbers = #tpu.dot_dimension_numbers<[1], [0], [0], [1], [0, 0, 1, 1], [], []>} : vector<8x128xbf16>, vector<128x128xbf16>, vector<8x128xf32> -> vector<8x128xf32>
    %22 = arith.addf %14, %21 : vector<8x128xf32>
    %23 = vector.broadcast %4 : vector<1x128xf32> to vector<8x128xf32>
    %24 = arith.addf %22, %23 : vector<8x128xf32>
    %c0_13 = arith.constant 0 : index
    %c0_14 = arith.constant 0 : index
    %25 = vector.load %arg4[%c0_13, %c0_14] : memref<8x128xf32, #tpu.memory_space<vmem>>, vector<8x128xf32>
    tpu.vector_store %arg4[%c0_13, %c0_14], %24 {strides = array<i32>} : memref<8x128xf32, #tpu.memory_space<vmem>>, vector<8x128xf32>,
    return
  }
  func.func @transform_0(%arg0: i32) -> (i32, i32) {
    %c0_i32 = arith.constant 0 : i32
    %c0_i32_0 = arith.constant 0 : i32
    return %arg0, %c0_i32 : i32, i32
  }
  func.func @transform_1(%arg0: i32) -> (i32, i32) {
    %c0_i32 = arith.constant 0 : i32
    %c0_i32_0 = arith.constant 0 : i32
    %c0_i32_1 = arith.constant 0 : i32
    return %c0_i32, %c0_i32_0 : i32, i32
  }
  func.func @transform_2(%arg0: i32) -> (i32, i32) {
    %c0_i32 = arith.constant 0 : i32
    %c0_i32_0 = arith.constant 0 : i32
    %c0_i32_1 = arith.constant 0 : i32
    return %c0_i32, %c0_i32_0 : i32, i32
  }
  func.func @transform_3(%arg0: i32) -> (i32, i32) {
    %c0_i32 = arith.constant 0 : i32
    %c0_i32_0 = arith.constant 0 : i32
    return %arg0, %c0_i32 : i32, i32
  }
}

</mosaic_0001>

<llo_original>
// kernel: tpu_custom_call.1
$region0: #{tpu_custom_call.1}
  #allocation0 [shape = 'u32[]', space=smem, size = 0x4, offset = 0x4, fixed_abs, tag = 'smem constant byte address 0x4 - core index']
  #allocation1 [shape = 'u32[144,128]{1,0:T(1,128)}', space=vmem, size = 0x12000, scoped, tag = 'internal scratch']
  %s0 = inlined_call_operand.hbm [shape: f32[8,32], index: 0, kind: input, shape index: {}]
  %s1 = inlined_call_operand.hbm [shape: bf16[416,128], index: 1, kind: input, shape index: {}]
  %s2 = inlined_call_operand.hbm [shape: f32[8,128], index: 2, kind: input, shape index: {}]
  %s3 = inlined_call_operand.hbm [shape: f32[8,128], index: 3, kind: output, shape index: {}]
  %s4 = sld [smem:[#allocation0]]
  $region34: #{tpu_custom_call.1} parent=0
    _
  %s6 = ssub.s32 1, %s4
  %s7 = scalar_select 0, %s6, %s4
  $region1: #{tpu_custom_call.1} parent=0
    #allocation2 [shape = 'u8[4096]{0}', space=vmem, size = 0x1000, scoped, tag = 'input window, operand 0, single buffered']
    #allocation3 [shape = 's32[1]{0}', space=sflag, size = 0x4, scoped, tag = 'scoped memory for tpu_custom_call.1']
    #allocation4 [shape = 's32[1]{0}', space=sflag, size = 0x4, scoped, tag = 'scoped memory for tpu_custom_call.1']
    #allocation5 [shape = 'u8[106496]{0}', space=vmem, size = 0x1a000, scoped, tag = 'input window, operand 1, single buffered']
    #allocation6 [shape = 's32[1]{0}', space=sflag, size = 0x4, scoped, tag = 'scoped memory for tpu_custom_call.1']
    #allocation7 [shape = 'u8[4096]{0}', space=vmem, size = 0x1000, scoped, tag = 'input window, operand 2, single buffered']
    #allocation8 [shape = 'u8[4096]{0}', space=vmem, size = 0x1000, scoped, tag = 'output window, operand 0, single buffered']
    %8 = vsyncpa [#allocation3], 0
    %9 = vsyncpa [#allocation6], 0
    %10 = vsyncpa [#allocation4], 0
    // Predicated region
    $region2: #{tpu_custom_call.1} parent=1 // pred_check
      _
    $region3: #{tpu_custom_call.1} parent=1 // pred_check_branch
      %12 = sbr.rel (0) target = $region5
    $region4: #{tpu_custom_call.1} parent=1 // pred_region
      %s14 = ssub.s32 128, 128
      %15 = vsyncadd [#allocation3], %s14
      %s17 = sshll.u32 [#allocation2], 4
      %s18 = int_to_ptr.vmem [resolvable:$true] %s17
      %20 = dma.hbm_to_vmem [thread:$0]  %s0, 128, %s18, [#allocation3]
    $region5: #{tpu_custom_call.1} parent=1 // pred_fallthru
      _
    // Predicated region
    $region6: #{tpu_custom_call.1} parent=1 // pred_check
      _
    $region7: #{tpu_custom_call.1} parent=1 // pred_check_branch
      %22 = sbr.rel (0) target = $region9
    $region8: #{tpu_custom_call.1} parent=1 // pred_region
      %s24 = ssub.s32 3328, 3328
      %25 = vsyncadd [#allocation6], %s24
      %s26 = sshll.u32 [#allocation5], 4
      %s27 = int_to_ptr.vmem [resolvable:$true] %s26
      %32 = dma.hbm_to_vmem [thread:$0]  %s1, 3328, %s27, [#allocation6], 64, 64, 4
    $region9: #{tpu_custom_call.1} parent=1 // pred_fallthru
      _
    // Predicated region
    $region10: #{tpu_custom_call.1} parent=1 // pred_check
      _
    $region11: #{tpu_custom_call.1} parent=1 // pred_check_branch
      %34 = sbr.rel (0) target = $region13
    $region12: #{tpu_custom_call.1} parent=1 // pred_region
      %s36 = ssub.s32 128, 128
      %37 = vsyncadd [#allocation6], %s36
      %s39 = sshll.u32 [#allocation7], 4
      %s40 = int_to_ptr.vmem [resolvable:$true] %s39
      %42 = dma.hbm_to_vmem [thread:$0]  %s2, 128, %s40, [#allocation6]
    $region13: #{tpu_custom_call.1} parent=1 // pred_fallthru
      _
    // Predicated region
    $region14: #{tpu_custom_call.1} parent=1 // pred_check
      _
    $region15: #{tpu_custom_call.1} parent=1 // pred_check_branch
      %44 = sbr.rel (0) target = $region17
    $region16: #{tpu_custom_call.1} parent=1 // pred_region
      %45 = dma.done [#allocation3], 128
    $region17: #{tpu_custom_call.1} parent=1 // pred_fallthru
      _
    // Predicated region
    $region18: #{tpu_custom_call.1} parent=1 // pred_check
      _
    $region19: #{tpu_custom_call.1} parent=1 // pred_check_branch
      %47 = sbr.rel (0) target = $region21
    $region20: #{tpu_custom_call.1} parent=1 // pred_region
      %48 = dma.done [#allocation6], 3328
    $region21: #{tpu_custom_call.1} parent=1 // pred_fallthru
      _
    // Predicated region
    $region22: #{tpu_custom_call.1} parent=1 // pred_check
      _
    $region23: #{tpu_custom_call.1} parent=1 // pred_check_branch
      %50 = sbr.rel (0) target = $region25
    $region24: #{tpu_custom_call.1} parent=1 // pred_region
      %51 = dma.done [#allocation6], 128
    $region25: #{tpu_custom_call.1} parent=1 // pred_fallthru
      _
    %v53 = vld [vmem:[#allocation2] sm:$0xff]
    %v54 = vpack.c.bf16 %v53, %v53
    %v55 = vld [vmem:[#allocation7] sm:$0x1]
    %v56 = vld [vmem:[#allocation7 + $0x1] sm:$0x1]
    %v57 = vld [vmem:[#allocation7 + $0x2] sm:$0x1]
    %v58 = vld [vmem:[#allocation5] sm:$0xf]
    %v59 = vld [vmem:[#allocation5 + $0x4] sm:$0xf]
    %v60 = vld [vmem:[#allocation5 + $0x8] sm:$0xf]
    %v61 = vld [vmem:[#allocation5 + $0xc] sm:$0xf]
    %v62 = vld [vmem:[#allocation5 + $0x10] sm:$0xf]
    %v63 = vld [vmem:[#allocation5 + $0x14] sm:$0xf]
    %v64 = vld [vmem:[#allocation5 + $0x18] sm:$0xf]
    %v65 = vld [vmem:[#allocation5 + $0x1c] sm:$0xf]
    %v66 = vld [vmem:[#allocation5 + $0x20] sm:$0xf]
    %v67 = vld [vmem:[#allocation5 + $0x24] sm:$0xf]
    %v68 = vld [vmem:[#allocation5 + $0x28] sm:$0xf]
    %v69 = vld [vmem:[#allocation5 + $0x2c] sm:$0xf]
    %v70 = vld [vmem:[#allocation5 + $0x30] sm:$0xf]
    %v71 = vld [vmem:[#allocation5 + $0x34] sm:$0xf]
    %v72 = vld [vmem:[#allocation5 + $0x38] sm:$0xf]
    %v73 = vld [vmem:[#allocation5 + $0x3c] sm:$0xf]
    %v74 = vld [vmem:[#allocation5 + $0x40] sm:$0xf]
    %v75 = vld [vmem:[#allocation5 + $0x44] sm:$0xf]
    %v76 = vld [vmem:[#allocation5 + $0x48] sm:$0xf]
    %v77 = vld [vmem:[#allocation5 + $0x4c] sm:$0xf]
    %v78 = vld [vmem:[#allocation5 + $0x50] sm:$0xf]
    %v79 = vld [vmem:[#allocation5 + $0x54] sm:$0xf]
    %v80 = vld [vmem:[#allocation5 + $0x58] sm:$0xf]
    %v81 = vld [vmem:[#allocation5 + $0x5c] sm:$0xf]
    %v82 = vld [vmem:[#allocation5 + $0x60] sm:$0xf]
    %v83 = vld [vmem:[#allocation5 + $0x64] sm:$0xf]
    %v84 = vld [vmem:[#allocation5 + $0x68] sm:$0xf]
    %v85 = vld [vmem:[#allocation5 + $0x6c] sm:$0xf]
    %v86 = vld [vmem:[#allocation5 + $0x70] sm:$0xf]
    %v87 = vld [vmem:[#allocation5 + $0x74] sm:$0xf]
    %v88 = vld [vmem:[#allocation5 + $0x78] sm:$0xf]
    %v89 = vld [vmem:[#allocation5 + $0x7c] sm:$0xf]
    %v90 = vld [vmem:[#allocation5 + $0x80] sm:$0xf]
    %v91 = vld [vmem:[#allocation5 + $0x84] sm:$0xf]
    %v92 = vld [vmem:[#allocation5 + $0x88] sm:$0xf]
    %v93 = vld [vmem:[#allocation5 + $0x8c] sm:$0xf]
    %v94 = vld [vmem:[#allocation5 + $0x90] sm:$0xf]
    %v95 = vld [vmem:[#allocation5 + $0x94] sm:$0xf]
    %v96 = vld [vmem:[#allocation5 + $0x98] sm:$0xf]
    %v97 = vld [vmem:[#allocation5 + $0x9c] sm:$0xf]
    %v98 = vld [vmem:[#allocation5 + $0xa0] sm:$0xf]
    %v99 = vld [vmem:[#allocation5 + $0xa4] sm:$0xf]
    %v100 = vld [vmem:[#allocation5 + $0xa8] sm:$0xf]
    %v101 = vld [vmem:[#allocation5 + $0xac] sm:$0xf]
    %v102 = vld [vmem:[#allocation5 + $0xb0] sm:$0xf]
    %v103 = vld [vmem:[#allocation5 + $0xb4] sm:$0xf]
    %v104 = vld [vmem:[#allocation5 + $0xb8] sm:$0xf]
    %v105 = vld [vmem:[#allocation5 + $0xbc] sm:$0xf]
    %v106 = vld [vmem:[#allocation5 + $0xc0] sm:$0xf]
    %v107 = vld [vmem:[#allocation5 + $0xc4] sm:$0xf]
    %v108 = vld [vmem:[#allocation5 + $0xc8] sm:$0xf]
    %v109 = vld [vmem:[#allocation5 + $0xcc] sm:$0xf]
    %v110 = vlaneseq
    %v111 = vshrl.u32 %v110, 7
    %v112 = vsub.s32 0, %v111
    %v113 = vrot.slane %v55, %v112
    %v118 = vunpack.c.l.b16 %v58
    %v119 = vunpack.c.l.b16 %v59
    %v120 = vunpack.c.l.b16 %v60
    %v121 = vunpack.c.l.b16 %v61
    %v122 = vpack.c.b16 %v119, %v118
    %v123 = vpack.c.b16 %v121, %v120
    %vm126 = vcmask 261120
    %v128 = vsel %vm126, %v54, 0
    %130 = vmatprep.subr.bf16.mxu0 0
    %131 = vmatpush1.bf16.msra.mxu0 %v122
    %132 = vmatprep.subr.bf16.mxu0 0
    %133 = vmatpush1.bf16.msra.mxu0 %v123
    %134 = vmatprep.subr.bf16.mxu0 0
    %135 = vmatpush1.bf16.msra.mxu0 0
    %136 = vmatprep.subr.bf16.mxu0 0
    %137 = vmatpush1.bf16.msra.mxu0 0
    %138 = vmatprep.subr.bf16.mxu0 0
    %139 = vmatpush1.bf16.msra.mxu0 0
    %140 = vmatprep.subr.bf16.mxu0 0
    %141 = vmatpush1.bf16.msra.mxu0 0
    %142 = vmatprep.subr.bf16.mxu0 0
    %143 = vmatpush1.bf16.msra.mxu0 0
    %144 = vmatprep.subr.bf16.mxu0 0
    %145 = vmatpush1.bf16.msra.mxu0 0
    %146 = vmatprep.subr.bf16.mxu0 0
    %147 = vmatpush1.bf16.msra.mxu0 0
    %148 = vmatprep.subr.bf16.mxu0 0
    %149 = vmatpush1.bf16.msra.mxu0 0
    %150 = vmatprep.subr.bf16.mxu0 0
    %151 = vmatpush1.bf16.msra.mxu0 0
    %152 = vmatprep.subr.bf16.mxu0 0
    %153 = vmatpush1.bf16.msra.mxu0 0
    %154 = vmatprep.subr.bf16.mxu0 0
    %155 = vmatpush1.bf16.msra.mxu0 0
    %156 = vmatprep.subr.bf16.mxu0 0
    %157 = vmatpush1.bf16.msra.mxu0 0
    %158 = vmatprep.subr.bf16.mxu0 0
    %159 = vmatpush1.bf16.msra.mxu0 0
    %160 = vmatprep.subr.bf16.mxu0 0
    %161 = vmatpush1.bf16.msra.mxu0 0
    %162 = vmatprep.mubr.bf16.mxu0 0
    %163 = vmatmul.mubr.bf16.gmra.mrb[0].mxu0 %v128
    %v164 = vpop.f32.mrb[0].mxu0
    %v165 = vadd.f32 %v113, %v164
    %v166 = vpop.f32.mrb[0].mxu0
    %v167 = vpop.f32.mrb[0].mxu0
    %v168 = vpop.f32.mrb[0].mxu0
    %169 = vdwg.mxu0
    %v170 = vtanh.pop %v165
    %v171 = vpack.c.bf16 %v170, %v170
    %v188 = vunpack.c.l.b16 %v62
    %v189 = vunpack.c.l.b16 %v63
    %v190 = vunpack.c.l.b16 %v64
    %v191 = vunpack.c.l.b16 %v65
    %v192 = vunpack.c.l.b16 %v66
    %v193 = vunpack.c.l.b16 %v67
    %v194 = vunpack.c.l.b16 %v68
    %v195 = vunpack.c.l.b16 %v69
    %v196 = vunpack.c.l.b16 %v70
    %v197 = vunpack.c.l.b16 %v71
    %v198 = vunpack.c.l.b16 %v72
    %v199 = vunpack.c.l.b16 %v73
    %v200 = vunpack.c.l.b16 %v74
    %v201 = vunpack.c.l.b16 %v75
    %v202 = vunpack.c.l.b16 %v76
    %v203 = vunpack.c.l.b16 %v77
    %v204 = vpack.c.b16 %v189, %v188
    %v205 = vpack.c.b16 %v191, %v190
    %v206 = vpack.c.b16 %v193, %v192
    %v207 = vpack.c.b16 %v195, %v194
    %v208 = vpack.c.b16 %v197, %v196
    %v209 = vpack.c.b16 %v199, %v198
    %v210 = vpack.c.b16 %v201, %v200
    %v211 = vpack.c.b16 %v203, %v202
    %220 = vmatprep.subr.bf16.mxu0 0
    %221 = vmatpush1.bf16.msra.mxu0 %v204
    %222 = vmatprep.subr.bf16.mxu0 0
    %223 = vmatpush1.bf16.msra.mxu0 %v205
    %224 = vmatprep.subr.bf16.mxu0 0
    %225 = vmatpush1.bf16.msra.mxu0 %v206
    %226 = vmatprep.subr.bf16.mxu0 0
    %227 = vmatpush1.bf16.msra.mxu0 %v207
    %228 = vmatprep.subr.bf16.mxu0 0
    %229 = vmatpush1.bf16.msra.mxu0 %v208
    %230 = vmatprep.subr.bf16.mxu0 0
    %231 = vmatpush1.bf16.msra.mxu0 %v209
    %232 = vmatprep.subr.bf16.mxu0 0
    %233 = vmatpush1.bf16.msra.mxu0 %v210
    %234 = vmatprep.subr.bf16.mxu0 0
    %235 = vmatpush1.bf16.msra.mxu0 %v211
    %236 = vmatprep.subr.bf16.mxu0 0
    %237 = vmatpush1.bf16.msra.mxu0 0
    %238 = vmatprep.subr.bf16.mxu0 0
    %239 = vmatpush1.bf16.msra.mxu0 0
    %240 = vmatprep.subr.bf16.mxu0 0
    %241 = vmatpush1.bf16.msra.mxu0 0
    %242 = vmatprep.subr.bf16.mxu0 0
    %243 = vmatpush1.bf16.msra.mxu0 0
    %244 = vmatprep.subr.bf16.mxu0 0
    %245 = vmatpush1.bf16.msra.mxu0 0
    %246 = vmatprep.subr.bf16.mxu0 0
    %247 = vmatpush1.bf16.msra.mxu0 0
    %248 = vmatprep.subr.bf16.mxu0 0
    %249 = vmatpush1.bf16.msra.mxu0 0
    %250 = vmatprep.subr.bf16.mxu0 0
    %251 = vmatpush1.bf16.msra.mxu0 0
    %252 = vmatprep.mubr.bf16.mxu0 0
    %253 = vmatmul.mubr.bf16.gmra.mrb[0].mxu0 %v171
    %v254 = vpop.f32.mrb[0].mxu0
    %v255 = vadd.f32 0.0, %v254
    %v256 = vpop.f32.mrb[0].mxu0
    %v257 = vpop.f32.mrb[0].mxu0
    %v258 = vpop.f32.mrb[0].mxu0
    %259 = vdwg.mxu0
    %v260 = vpack.c.bf16 %v255, %v255
    %v261 = vlaneseq
    %v262 = vshrl.u32 %v261, 7
    %v263 = vsub.s32 0, %v262
    %v264 = vrot.slane %v56, %v263
    %v281 = vunpack.c.l.b16 %v78
    %v282 = vunpack.c.l.b16 %v79
    %v283 = vunpack.c.l.b16 %v80
    %v284 = vunpack.c.l.b16 %v81
    %v285 = vunpack.c.l.b16 %v82
    %v286 = vunpack.c.l.b16 %v83
    %v287 = vunpack.c.l.b16 %v84
    %v288 = vunpack.c.l.b16 %v85
    %v289 = vunpack.c.l.b16 %v86
    %v290 = vunpack.c.l.b16 %v87
    %v291 = vunpack.c.l.b16 %v88
    %v292 = vunpack.c.l.b16 %v89
    %v293 = vunpack.c.l.b16 %v90
    %v294 = vunpack.c.l.b16 %v91
    %v295 = vunpack.c.l.b16 %v92
    %v296 = vunpack.c.l.b16 %v93
    %v297 = vpack.c.b16 %v282, %v281
    %v298 = vpack.c.b16 %v284, %v283
    %v299 = vpack.c.b16 %v286, %v285
    %v300 = vpack.c.b16 %v288, %v287
    %v301 = vpack.c.b16 %v290, %v289
    %v302 = vpack.c.b16 %v292, %v291
    %v303 = vpack.c.b16 %v294, %v293
    %v304 = vpack.c.b16 %v296, %v295
    %313 = vmatprep.subr.bf16.mxu0 0
    %314 = vmatpush1.bf16.msra.mxu0 %v297
    %315 = vmatprep.subr.bf16.mxu0 0
    %316 = vmatpush1.bf16.msra.mxu0 %v298
    %317 = vmatprep.subr.bf16.mxu0 0
    %318 = vmatpush1.bf16.msra.mxu0 %v299
    %319 = vmatprep.subr.bf16.mxu0 0
    %320 = vmatpush1.bf16.msra.mxu0 %v300
    %321 = vmatprep.subr.bf16.mxu0 0
    %322 = vmatpush1.bf16.msra.mxu0 %v301
    %323 = vmatprep.subr.bf16.mxu0 0
    %324 = vmatpush1.bf16.msra.mxu0 %v302
    %325 = vmatprep.subr.bf16.mxu0 0
    %326 = vmatpush1.bf16.msra.mxu0 %v303
    %327 = vmatprep.subr.bf16.mxu0 0
    %328 = vmatpush1.bf16.msra.mxu0 %v304
    %329 = vmatprep.subr.bf16.mxu0 0
    %330 = vmatpush1.bf16.msra.mxu0 0
    %331 = vmatprep.subr.bf16.mxu0 0
    %332 = vmatpush1.bf16.msra.mxu0 0
    %333 = vmatprep.subr.bf16.mxu0 0
    %334 = vmatpush1.bf16.msra.mxu0 0
    %335 = vmatprep.subr.bf16.mxu0 0
    %336 = vmatpush1.bf16.msra.mxu0 0
    %337 = vmatprep.subr.bf16.mxu0 0
    %338 = vmatpush1.bf16.msra.mxu0 0
    %339 = vmatprep.subr.bf16.mxu0 0
    %340 = vmatpush1.bf16.msra.mxu0 0
    %341 = vmatprep.subr.bf16.mxu0 0
    %342 = vmatpush1.bf16.msra.mxu0 0
    %343 = vmatprep.subr.bf16.mxu0 0
    %344 = vmatpush1.bf16.msra.mxu0 0
    %345 = vmatprep.mubr.bf16.mxu0 0
    %346 = vmatmul.mubr.bf16.gmra.mrb[0].mxu0 %v260
    %v347 = vpop.f32.mrb[0].mxu0
    %v348 = vadd.f32 %v264, %v347
    %v349 = vpop.f32.mrb[0].mxu0
    %v350 = vpop.f32.mrb[0].mxu0
    %v351 = vpop.f32.mrb[0].mxu0
    %352 = vdwg.mxu0
    %v353 = vtanh.pop %v348
    %v354 = vpack.c.bf16 %v353, %v353
    %v371 = vunpack.c.l.b16 %v94
    %v372 = vunpack.c.l.b16 %v95
    %v373 = vunpack.c.l.b16 %v96
    %v374 = vunpack.c.l.b16 %v97
    %v375 = vunpack.c.l.b16 %v98
    %v376 = vunpack.c.l.b16 %v99
    %v377 = vunpack.c.l.b16 %v100
    %v378 = vunpack.c.l.b16 %v101
    %v379 = vunpack.c.l.b16 %v102
    %v380 = vunpack.c.l.b16 %v103
    %v381 = vunpack.c.l.b16 %v104
    %v382 = vunpack.c.l.b16 %v105
    %v383 = vunpack.c.l.b16 %v106
    %v384 = vunpack.c.l.b16 %v107
    %v385 = vunpack.c.l.b16 %v108
    %v386 = vunpack.c.l.b16 %v109
    %v387 = vpack.c.b16 %v372, %v371
    %v388 = vpack.c.b16 %v374, %v373
    %v389 = vpack.c.b16 %v376, %v375
    %v390 = vpack.c.b16 %v378, %v377
    %v391 = vpack.c.b16 %v380, %v379
    %v392 = vpack.c.b16 %v382, %v381
    %v393 = vpack.c.b16 %v384, %v383
    %v394 = vpack.c.b16 %v386, %v385
    %403 = vmatprep.subr.bf16.mxu0 0
    %404 = vmatpush1.bf16.msra.mxu0 %v387
    %405 = vmatprep.subr.bf16.mxu0 0
    %406 = vmatpush1.bf16.msra.mxu0 %v388
    %407 = vmatprep.subr.bf16.mxu0 0
    %408 = vmatpush1.bf16.msra.mxu0 %v389
    %409 = vmatprep.subr.bf16.mxu0 0
    %410 = vmatpush1.bf16.msra.mxu0 %v390
    %411 = vmatprep.subr.bf16.mxu0 0
    %412 = vmatpush1.bf16.msra.mxu0 %v391
    %413 = vmatprep.subr.bf16.mxu0 0
    %414 = vmatpush1.bf16.msra.mxu0 %v392
    %415 = vmatprep.subr.bf16.mxu0 0
    %416 = vmatpush1.bf16.msra.mxu0 %v393
    %417 = vmatprep.subr.bf16.mxu0 0
    %418 = vmatpush1.bf16.msra.mxu0 %v394
    %419 = vmatprep.subr.bf16.mxu0 0
    %420 = vmatpush1.bf16.msra.mxu0 0
    %421 = vmatprep.subr.bf16.mxu0 0
    %422 = vmatpush1.bf16.msra.mxu0 0
    %423 = vmatprep.subr.bf16.mxu0 0
    %424 = vmatpush1.bf16.msra.mxu0 0
    %425 = vmatprep.subr.bf16.mxu0 0
    %426 = vmatpush1.bf16.msra.mxu0 0
    %427 = vmatprep.subr.bf16.mxu0 0
    %428 = vmatpush1.bf16.msra.mxu0 0
    %429 = vmatprep.subr.bf16.mxu0 0
    %430 = vmatpush1.bf16.msra.mxu0 0
    %431 = vmatprep.subr.bf16.mxu0 0
    %432 = vmatpush1.bf16.msra.mxu0 0
    %433 = vmatprep.subr.bf16.mxu0 0
    %434 = vmatpush1.bf16.msra.mxu0 0
    %435 = vmatprep.mubr.bf16.mxu0 0
    %436 = vmatmul.mubr.bf16.gmra.mrb[0].mxu0 %v354
    %v437 = vpop.f32.mrb[0].mxu0
    %v438 = vadd.f32 0.0, %v437
    %v439 = vpop.f32.mrb[0].mxu0
    %v440 = vpop.f32.mrb[0].mxu0
    %v441 = vpop.f32.mrb[0].mxu0
    %442 = vdwg.mxu0
    %v443 = vadd.f32 %v255, %v438
    %v444 = vlaneseq
    %v445 = vshrl.u32 %v444, 7
    %v446 = vsub.s32 0, %v445
    %v447 = vrot.slane %v57, %v446
    %v448 = vadd.f32 %v443, %v447
    %449 = vst [vmem:[#allocation8] sm:$0xff] %v448
    // Predicated region
    $region26: #{tpu_custom_call.1} parent=1 // pred_check
      _
    $region27: #{tpu_custom_call.1} parent=1 // pred_check_branch
      %451 = sbr.rel (0) target = $region29
    $region28: #{tpu_custom_call.1} parent=1 // pred_region
      %s453 = ssub.s32 128, 128
      %454 = vsyncadd [#allocation4], %s453
      %s456 = sshll.u32 [#allocation8], 4
      %s457 = int_to_ptr.vmem [resolvable:$true] %s456
      %459 = dma.vmem_to_hbm [thread:$0]  %s457, 128, %s3, [#allocation4]
    $region29: #{tpu_custom_call.1} parent=1 // pred_fallthru
      _
    // Predicated region
    $region30: #{tpu_custom_call.1} parent=1 // pred_check
      _
    $region31: #{tpu_custom_call.1} parent=1 // pred_check_branch
      %461 = sbr.rel (0) target = $region33
    $region32: #{tpu_custom_call.1} parent=1 // pred_region
      %462 = dma.done [#allocation4], 128
    $region33: #{tpu_custom_call.1} parent=1 // pred_fallthru
      _
    %463 = vsyncpa [#allocation3], 1
    %464 = vsyncpa [#allocation6], 1
    %465 = vsyncpa [#allocation4], 1

</llo_original>
